<compile_context>
chip_gen: v6e
topology: v6e:2x2x1
jax: 0.10.0
libtpu: 0.0.40
codegen_flags: <defaults>
</compile_context>

<pallas_src>
import functools
import math

import jax
import jax.numpy as jnp
from jax.experimental import pallas as pl
from jax.experimental.pallas import tpu as pltpu


def _attention_kernel(q_ref, k_ref, v_ref, out_ref, *, fc, exp_bf16):
    """One (batch row, query tile) step.

    q_ref  : (tq, c)     bf16, already scaled by 1/sqrt(c)
    k_ref  : (c, n)      bf16, channel-first, resident for the whole row
    v_ref  : (fc+1, n)   bf16, [flow ; ones] channel-first, resident for the row
    out_ref: (fc, tq)    lane-dense output tile
    """
    # scores[q, k] = <query_q, key_k> / sqrt(c): (tq, c) @ (c, n) -> (tq, n), f32 acc.
    scores = jnp.dot(q_ref[...], k_ref[...], preferred_element_type=jnp.float32)

    # Numerically stable softmax numerator; normalization is deferred to the output.
    m = jnp.max(scores, axis=-1, keepdims=True)            # (tq, 1) f32
    if exp_bf16:
        # v6e / v7x EUP has a bf16 path; e lands directly in the MXU dtype.
        e = jnp.exp((scores - m).astype(jnp.bfloat16))     # (tq, n) bf16
    else:
        e = jnp.exp(scores - m).astype(jnp.bfloat16)       # f32 exp (v5e-safe)

    # (fc+1, n) . (tq, n)^T -> (fc+1, tq); rows [:fc] are the flow-weighted sums,
    # row [fc] (the appended ones row) is the softmax denominator per query, so the
    # denominator never needs an XLU lane reduction or a layout transpose.
    out_ext = jax.lax.dot_general(
        v_ref[...], e,
        dimension_numbers=(((1,), (1,)), ((), ())),
        preferred_element_type=jnp.float32)

    inv = pl.reciprocal(out_ext[fc:fc + 1, :], approx=True)        # (1, tq)
    out_ref[...] = (out_ext[:fc, :] * inv).astype(out_ref.dtype)   # lane-dense store


def _device_kind():
    try:
        return jax.devices()[0].device_kind.lower()
    except Exception:
        return ""


def self_correlation_softmax_3d(feature0, flow, wq, bq, wk, bk, *, tq=None):
    """feature0: (b, c, n), flow: (b, fc, n), wq/wk: (c, c), bq/bk: (c,) or (1, c)."""
    b, c, n = feature0.shape
    fc = flow.shape[1]
    kind = _device_kind()

    # ---- q / k projections hoisted out of the kernel (plain XLA, O(c^2 n)) --------
    bq_col = jnp.reshape(bq, (1, c, 1)).astype(jnp.float32)
    bk_col = jnp.reshape(bk, (1, c, 1)).astype(jnp.float32)
    feat_f32 = feature0.astype(jnp.float32)
    # nn.Linear: y = x W^T + b  ==> channel-first: y_cf = W @ x_cf + b[:, None]
    q_cf = jnp.einsum("oc,bcn->bon", wq.astype(jnp.float32), feat_f32) + bq_col
    k_cf = jnp.einsum("oc,bcn->bon", wk.astype(jnp.float32), q_cf) + bk_col

    # Pre-scale q by 1/sqrt(c) in f32, then cast to bf16; present q token-major so the
    # scores matmul is a plain (tq, c) @ (c, n) with no in-kernel transpose.
    q_nm = jnp.transpose(q_cf * (1.0 / math.sqrt(c)), (0, 2, 1)).astype(jnp.bfloat16)
    k_bf = k_cf.astype(jnp.bfloat16)
    # value with an appended ones-row: the extra matmul row yields the softmax denom.
    v_ext = jnp.concatenate(
        [flow.astype(jnp.bfloat16), jnp.ones((b, 1, n), jnp.bfloat16)], axis=1)

    # ---- tile size / VMEM budget (generation-aware) --------------------------------
    if tq is None:
        if n <= 512:
            tq = n                                    # single tile, block == full dim
        elif ("v5" in kind) or ("v6" in kind):
            tq = 512                                  # 128 MiB VMEM parts
        else:
            tq = 256                                  # v7x (64 MiB) / unknown
    n_tiles = pl.cdiv(n, tq)

    out_itemsize = jnp.dtype(feature0.dtype).itemsize
    est = (2 * (tq * c * 2)                 # q tile, double-buffered bf16
           + 2 * (c * n * 2)                # k row, double-buffered bf16
           + 2 * ((fc + 1) * n * 2)         # value row, double-buffered bf16
           + 2 * (fc * tq * out_itemsize)   # output tile, double-buffered
           + tq * n * (4 + 2)               # live scores (f32) + e (bf16)
           + (2 << 20))                     # headroom
    cap = (96 << 20) if (("v5" in kind) or ("v6" in kind)) else (48 << 20)
    vmem_limit = int(min(max(32 << 20, est), cap))

    exp_bf16 = ("v6" in kind) or ("v7" in kind) or ("7x" in kind)

    kernel = functools.partial(_attention_kernel, fc=fc, exp_bf16=exp_bf16)
    return pl.pallas_call(
        kernel,
        out_shape=jax.ShapeDtypeStruct((b, fc, n), feature0.dtype),
        grid_spec=pltpu.PrefetchScalarGridSpec(
            num_scalar_prefetch=0,
            grid=(b, n_tiles),
            in_specs=[
                # Leading batch dim squeezed (None) -> kernel sees 2-D refs.
                pl.BlockSpec((None, tq, c), lambda i, j: (i, j, 0)),       # q (tq, c)
                pl.BlockSpec((None, c, n), lambda i, j: (i, 0, 0)),        # k (c, n)
                pl.BlockSpec((None, fc + 1, n), lambda i, j: (i, 0, 0)),   # [flow;1]
            ],
            out_specs=pl.BlockSpec((None, fc, tq), lambda i, j: (i, 0, j)),
        ),
        compiler_params=pltpu.CompilerParams(
            # No cross-iteration state: both axes fully parallel (megacore on v7x).
            dimension_semantics=("parallel", "parallel"),
            vmem_limit_bytes=vmem_limit,
        ),
    )(q_nm, k_bf, v_ext)


# ------------------------------ reference & test -----------------------------------
def _xavier_uniform(key, shape, dtype=jnp.float32):
    fan_in, fan_out = shape[1], shape[0]
    a = math.sqrt(6.0 / (fan_in + fan_out))
    return jax.random.uniform(key, shape, dtype, minval=-a, maxval=a)


def _reference(feature0, flow, wq, bq, wk, bk):
    b, c, n = feature0.shape
    x = jnp.transpose(feature0, (0, 2, 1))                     # (b, n, c)
    query = x @ wq.T + bq.reshape(1, 1, c)
    key = query @ wk.T + bk.reshape(1, 1, c)
    value = jnp.transpose(flow, (0, 2, 1))                     # (b, n, fc)
    scores = jnp.einsum("bnc,bmc->bnm", query, key) / math.sqrt(c)
    prob = jax.nn.softmax(scores, axis=-1)
    out = jnp.einsum("bnm,bmf->bnf", prob, value)
    return jnp.transpose(out, (0, 2, 1))                       # (b, fc, n)


def _run_case(key, b, c, n, fc, tq=None):
    k_feat, k_flow, k_wq, k_bq, k_wk, k_bk = jax.random.split(key, 6)
    feature0 = jax.random.normal(k_feat, (b, c, n), jnp.float32)
    flow = jax.random.normal(k_flow, (b, fc, n), jnp.float32)
    # xavier_uniform weights (as in __init__), uniform(+-1/sqrt(c)) biases (Linear default).
    wq = _xavier_uniform(k_wq, (c, c))
    wk = _xavier_uniform(k_wk, (c, c))
    bound = 1.0 / math.sqrt(c)
    bq = jax.random.uniform(k_bq, (c,), jnp.float32, -bound, bound)
    bk = jax.random.uniform(k_bk, (c,), jnp.float32, -bound, bound)

    out = jax.block_until_ready(
        self_correlation_softmax_3d(feature0, flow, wq, bq, wk, bk, tq=tq))
    ref = _reference(feature0, flow, wq, bq, wk, bk)
    assert out.shape == (b, fc, n), out.shape
    max_err = float(jnp.abs(out - ref).max())
    # Tolerance reflects bf16 MXU operands (f32 accumulation) + approx reciprocal.
    assert jnp.allclose(out, ref, atol=3e-2, rtol=3e-2), max_err


if __name__ == "__main__":
    root = jax.random.PRNGKey(0)
    k_small, k_multi = jax.random.split(root)

    # Small single-tile case (tq == n).
    _run_case(k_small, b=2, c=32, n=64, fc=2)
    # Multi-tile + padded-tail case (n not a multiple of tq) to cover masked stores.
    _run_case(k_multi, b=1, c=32, n=320, fc=2, tq=128)

    print("KERNEL_OK")
</pallas_src>

<mosaic_0001>
module attributes {stable_mosaic.version = 11 : i64} {
  func.func @_attention_kernel(%arg0: i32, %arg1: i32, %arg2: memref<1x64x32xbf16, #tpu.memory_space<vmem>>, %arg3: memref<1x32x64xbf16, #tpu.memory_space<vmem>>, %arg4: memref<1x3x64xbf16, #tpu.memory_space<vmem>>, %arg5: memref<1x2x64xf32, #tpu.memory_space<vmem>>) attributes {dimension_semantics = [#tpu.dimension_semantics<parallel>, #tpu.dimension_semantics<parallel>], iteration_bounds = array<i64: 2, 1>, scalar_prefetch = 0 : i64, scratch_operands = 0 : i64, tpu.core_type = #tpu.core_type<tc>, window_params = [{transform_indices = @transform_0, window_bounds = array<i64: 1, 64, 32>}, {transform_indices = @transform_1, window_bounds = array<i64: 1, 32, 64>}, {transform_indices = @transform_2, window_bounds = array<i64: 1, 3, 64>}, {transform_indices = @transform_3, window_bounds = array<i64: 1, 2, 64>}]} {
    %c0 = arith.constant 0 : index
    %c0_0 = arith.constant 0 : index
    %c0_1 = arith.constant 0 : index
    %0 = vector.load %arg2[%c0, %c0_0, %c0_1] : memref<1x64x32xbf16, #tpu.memory_space<vmem>>, vector<1x64x32xbf16>
    %1 = vector.shape_cast %0 : vector<1x64x32xbf16> to vector<64x32xbf16>
    %c0_2 = arith.constant 0 : index
    %c0_3 = arith.constant 0 : index
    %c0_4 = arith.constant 0 : index
    %2 = vector.load %arg3[%c0_2, %c0_3, %c0_4] : memref<1x32x64xbf16, #tpu.memory_space<vmem>>, vector<1x32x64xbf16>
    %3 = vector.shape_cast %2 : vector<1x32x64xbf16> to vector<32x64xbf16>
    %cst = arith.constant dense<0.000000e+00> : vector<64x64xf32>
    %4 = tpu.matmul %1, %3, %cst {dimension_numbers = #tpu.dot_dimension_numbers<[1], [0], [0], [1], [0, 0, 1, 1], [], []>} : vector<64x32xbf16>, vector<32x64xbf16>, vector<64x64xf32> -> vector<64x64xf32>
    %cst_5 = arith.constant dense<0xFF800000> : vector<64xf32>
    %5 = vector.multi_reduction <maximumf>, %4, %cst_5 [1] : vector<64x64xf32> to vector<64xf32>
    %6 = vector.shape_cast %5 : vector<64xf32> to vector<64x1xf32>
    %7 = vector.broadcast %6 : vector<64x1xf32> to vector<64x64xf32>
    %8 = arith.subf %4, %7 : vector<64x64xf32>
    %9 = math.exp %8 : vector<64x64xf32>
    %10 = arith.truncf %9 : vector<64x64xf32> to vector<64x64xbf16>
    %c0_6 = arith.constant 0 : index
    %c0_7 = arith.constant 0 : index
    %c0_8 = arith.constant 0 : index
    %11 = vector.load %arg4[%c0_6, %c0_7, %c0_8] : memref<1x3x64xbf16, #tpu.memory_space<vmem>>, vector<1x3x64xbf16>
    %12 = vector.shape_cast %11 : vector<1x3x64xbf16> to vector<3x64xbf16>
    %cst_9 = arith.constant dense<0.000000e+00> : vector<3x64xf32>
    %13 = tpu.matmul %12, %10, %cst_9 {dimension_numbers = #tpu.dot_dimension_numbers<[1], [1], [0], [0], [0, 0, 1, 0], [], []>} : vector<3x64xbf16>, vector<64x64xbf16>, vector<3x64xf32> -> vector<3x64xf32>
    %14 = vector.extract_strided_slice %13 {offsets = [2, 0], sizes = [1, 64], strides = [1, 1]} : vector<3x64xf32> to vector<1x64xf32>
    %15 = tpu.reciprocal %14 {approx = true} : vector<1x64xf32> -> vector<1x64xf32>
    %16 = vector.extract_strided_slice %13 {offsets = [0, 0], sizes = [2, 64], strides = [1, 1]} : vector<3x64xf32> to vector<2x64xf32>
    %17 = vector.broadcast %15 : vector<1x64xf32> to vector<2x64xf32>
    %18 = arith.mulf %16, %17 : vector<2x64xf32>
    %c0_10 = arith.constant 0 : index
    %c0_11 = arith.constant 0 : index
    %c0_12 = arith.constant 0 : index
    %19 = vector.load %arg5[%c0_10, %c0_11, %c0_12] : memref<1x2x64xf32, #tpu.memory_space<vmem>>, vector<1x2x64xf32>
    %20 = vector.shape_cast %19 : vector<1x2x64xf32> to vector<2x64xf32>
    %21 = vector.shape_cast %18 : vector<2x64xf32> to vector<1x2x64xf32>
    tpu.vector_store %arg5[%c0_10, %c0_11, %c0_12], %21 {strides = array<i32>} : memref<1x2x64xf32, #tpu.memory_space<vmem>>, vector<1x2x64xf32>,
    return
  }
  func.func @transform_0(%arg0: i32, %arg1: i32) -> (i32, i32, i32) {
    %c0_i32 = arith.constant 0 : i32
    %c0_i32_0 = arith.constant 0 : i32
    return %arg0, %arg1, %c0_i32 : i32, i32, i32
  }
  func.func @transform_1(%arg0: i32, %arg1: i32) -> (i32, i32, i32) {
    %c0_i32 = arith.constant 0 : i32
    %c0_i32_0 = arith.constant 0 : i32
    %c0_i32_1 = arith.constant 0 : i32
    return %arg0, %c0_i32, %c0_i32_0 : i32, i32, i32
  }
  func.func @transform_2(%arg0: i32, %arg1: i32) -> (i32, i32, i32) {
    %c0_i32 = arith.constant 0 : i32
    %c0_i32_0 = arith.constant 0 : i32
    %c0_i32_1 = arith.constant 0 : i32
    return %arg0, %c0_i32, %c0_i32_0 : i32, i32, i32
  }
  func.func @transform_3(%arg0: i32, %arg1: i32) -> (i32, i32, i32) {
    %c0_i32 = arith.constant 0 : i32
    %c0_i32_0 = arith.constant 0 : i32
    return %arg0, %c0_i32, %arg1 : i32, i32, i32
  }
}

</mosaic_0001>

<llo_original>
// kernel: tpu_custom_call.1
$region0: #{tpu_custom_call.1}
  #allocation0 [shape = 'u32[]', space=smem, size = 0x4, offset = 0x4, fixed_abs, tag = 'smem constant byte address 0x4 - core index']
  #allocation1 [shape = 'u32[144,128]{1,0:T(1,128)}', space=vmem, size = 0x12000, scoped, tag = 'internal scratch']
  %s0 = inlined_call_operand.vmem [shape: bf16[2,64,32], index: 0, kind: input, shape index: {}]
  %s1 = inlined_call_operand.vmem [shape: bf16[2,32,64], index: 1, kind: input, shape index: {}]
  %s2 = inlined_call_operand.vmem [shape: bf16[2,3,64], index: 2, kind: input, shape index: {}]
  %s3 = inlined_call_operand.hbm [shape: f32[2,2,64], index: 3, kind: output, shape index: {}]
  %s4 = sld [smem:[#allocation0]]
  $region45: #{tpu_custom_call.1} parent=0
    _
  %s6 = ssub.s32 1, %s4
  %s7 = scalar_select 0, %s6, %s4
  $region1: #{tpu_custom_call.1} parent=0
    #allocation2 [shape = 'u8[2048]{0}', space=vmem, size = 0x800, scoped, tag = 'output window, operand 0']
    #allocation3 [shape = 's32[2]{0}', space=sflag, size = 0x8, scoped, tag = 'scoped memory for tpu_custom_call.1']
    %8 = vsyncpa [#allocation3], 0
    %s9 = scalar_lea.sflag [#allocation3], 1
    %10 = vsyncpa %s9, 0
    loop: start=0, step=1, limit=4
    $region2: #{tpu_custom_call.1} parent=1 // loop_pre_header
      _
    $region3: #{tpu_custom_call.1} parent=1 // loop_header
      %s12 = sphi 0, %s16
      %p13 = scmp.ge.s32.totalorder %s12, 4
      %s19 = sphi 0, %s31
      %s20 = sphi 0, %s27
      %s21 = sphi 0, %s19
      %s22 = sphi 0, %s20
      %s23 = sphi 0, %s21
      %s24 = sphi 0, %s22
      %s36 = sphi 0, %s38
      %s39 = sphi 0, %s36
      %s40 = sphi 0, %s39
      %s56 = sphi 0, %s40
      %s62 = sphi 0, %s64
      %s65 = sphi 0, %s62
      %s66 = sphi 0, %s65
      %s82 = sphi 0, %s66
      %s88 = sphi 0, %s90
      %s91 = sphi 0, %s88
      %s92 = sphi 0, %s91
      %s108 = sphi 0, %s92
      %s116 = sphi 0, %s118
      %s119 = sphi 0, %s116
      %s120 = sphi 0, %s119
      %s136 = sphi 0, %s120
    $region4: #{tpu_custom_call.1} parent=1 // loop_header_branch
      %15 = sbr.rel (%p13) target = $region8
    $region5: #{tpu_custom_call.1} parent=1 // loop_body
      %s17 = ssub.s32 %s12, 1
      %s18 = ssub.s32 %s12, 2
      %s25 = sadd.s32 1, %s20
      %p26 = scmp.ge.s32.totalorder %s25, 1
      %s27 = scalar_select %p26, 0, %s25
      %s28 = sadd.s32 1, %s19
      %s29 = scalar_select %p26, %s28, %s19
      %p30 = scmp.ge.s32.totalorder %s29, 2
      %s31 = scalar_select %p30, 0, %s29
      %s32 = ssub.s32 %s19, %s31
      %s33 = ssub.s32 %s20, %s27
      %s34 = sor.u32 %s32, %s33
      %p35 = scmp.eq.s32.totalorder %s34, 0
      %s37 = sadd.s32 %s36, 1
      %s38 = scalar_select %p35, %s36, %s37
      %p41 = pneg %p35
      %p42 = scmp.eq.s32.totalorder %s12, 1
      %p43 = por %p41, %p42
      %p44 = scmp.ne.s32.totalorder %s36, %s39
      %p45 = scmp.eq.s32.totalorder %s12, 0
      %p46 = por %p44, %p45
      %p47 = scmp.ne.s32.totalorder %s36, %s39
      %p48 = scmp.eq.s32.totalorder %s17, 1
      %p49 = por %p47, %p48
      %p50 = scmp.ne.s32.totalorder %s39, %s40
      %p51 = scmp.eq.s32.totalorder %s17, 0
      %p52 = por %p50, %p51
      %p53 = scmp.ne.s32.totalorder %s39, %s40
      %p54 = scmp.eq.s32.totalorder %s18, 1
      %p55 = por %p53, %p54
      %p57 = scmp.ne.s32.totalorder %s40, %s56
      %p58 = scmp.eq.s32.totalorder %s18, 0
      %p59 = por %p57, %p58
      %s60 = ssub.s32 %s19, %s31
      %p61 = scmp.eq.s32.totalorder %s60, 0
      %s63 = sadd.s32 %s62, 1
      %s64 = scalar_select %p61, %s62, %s63
      %p67 = pneg %p61
      %p68 = scmp.eq.s32.totalorder %s12, 1
      %p69 = por %p67, %p68
      %p70 = scmp.ne.s32.totalorder %s62, %s65
      %p71 = scmp.eq.s32.totalorder %s12, 0
      %p72 = por %p70, %p71
      %p73 = scmp.ne.s32.totalorder %s62, %s65
      %p74 = scmp.eq.s32.totalorder %s17, 1
      %p75 = por %p73, %p74
      %p76 = scmp.ne.s32.totalorder %s65, %s66
      %p77 = scmp.eq.s32.totalorder %s17, 0
      %p78 = por %p76, %p77
      %p79 = scmp.ne.s32.totalorder %s65, %s66
      %p80 = scmp.eq.s32.totalorder %s18, 1
      %p81 = por %p79, %p80
      %p83 = scmp.ne.s32.totalorder %s66, %s82
      %p84 = scmp.eq.s32.totalorder %s18, 0
      %p85 = por %p83, %p84
      %s86 = ssub.s32 %s19, %s31
      %p87 = scmp.eq.s32.totalorder %s86, 0
      %s89 = sadd.s32 %s88, 1
      %s90 = scalar_select %p87, %s88, %s89
      %p93 = pneg %p87
      %p94 = scmp.eq.s32.totalorder %s12, 1
      %p95 = por %p93, %p94
      %p96 = scmp.ne.s32.totalorder %s88, %s91
      %p97 = scmp.eq.s32.totalorder %s12, 0
      %p98 = por %p96, %p97
      %p99 = scmp.ne.s32.totalorder %s88, %s91
      %p100 = scmp.eq.s32.totalorder %s17, 1
      %p101 = por %p99, %p100
      %p102 = scmp.ne.s32.totalorder %s91, %s92
      %p103 = scmp.eq.s32.totalorder %s17, 0
      %p104 = por %p102, %p103
      %p105 = scmp.ne.s32.totalorder %s91, %s92
      %p106 = scmp.eq.s32.totalorder %s18, 1
      %p107 = por %p105, %p106
      %p109 = scmp.ne.s32.totalorder %s92, %s108
      %p110 = scmp.eq.s32.totalorder %s18, 0
      %p111 = por %p109, %p110
      %s112 = ssub.s32 %s19, %s31
      %s113 = ssub.s32 %s20, %s27
      %s114 = sor.u32 %s112, %s113
      %p115 = scmp.eq.s32.totalorder %s114, 0
      %s117 = sadd.s32 %s116, 1
      %s118 = scalar_select %p115, %s116, %s117
      %p121 = pneg %p115
      %p122 = scmp.eq.s32.totalorder %s12, 1
      %p123 = por %p121, %p122
      %p124 = scmp.ne.s32.totalorder %s116, %s119
      %p125 = scmp.eq.s32.totalorder %s12, 0
      %p126 = por %p124, %p125
      %p127 = scmp.ne.s32.totalorder %s116, %s119
      %p128 = scmp.eq.s32.totalorder %s17, 1
      %p129 = por %p127, %p128
      %p130 = scmp.ne.s32.totalorder %s119, %s120
      %p131 = scmp.eq.s32.totalorder %s17, 0
      %p132 = por %p130, %p131
      %p133 = scmp.ne.s32.totalorder %s119, %s120
      %p134 = scmp.eq.s32.totalorder %s18, 1
      %p135 = por %p133, %p134
      %p137 = scmp.ne.s32.totalorder %s120, %s136
      %p138 = scmp.eq.s32.totalorder %s18, 0
      %p139 = por %p137, %p138
      %p140 = scmp.le.s32.totalorder 1, %s12
      %p141 = scmp.lt.s32.totalorder %s12, 3
      %p142 = pnand %p140, %p141
      %p143 = pneg %p142
      // Predicated region
      $region9: #{tpu_custom_call.1} parent=5 // pred_check
        _
      $region10: #{tpu_custom_call.1} parent=5 // pred_check_branch
        %145 = sbr.rel (%p142) target = $region12
      $region11: #{tpu_custom_call.1} parent=5 // pred_region
        %s146 = ssub.s32 %s12, 1
      $region12: #{tpu_custom_call.1} parent=5 // pred_fallthru
        _
      %p147 = scmp.lt.s32.totalorder %s12, 2
      // Predicated region
      $region13: #{tpu_custom_call.1} parent=5 // pred_check
        %p148 = pneg %p147
      $region14: #{tpu_custom_call.1} parent=5 // pred_check_branch
        %150 = sbr.rel (%p148) target = $region16
      $region15: #{tpu_custom_call.1} parent=5 // pred_region
        // Predicated region
        $region17: #{tpu_custom_call.1} parent=15 // pred_check
          %p151 = pneg %p46
        $region18: #{tpu_custom_call.1} parent=15 // pred_check_branch
          %153 = sbr.rel (%p151) target = $region20
        $region19: #{tpu_custom_call.1} parent=15 // pred_region
          %s154 = smul.u32 8, %s20
          %p155 = scmp.lt.s32.totalorder %s19, 1
          %s156 = scalar_select %p155, %s19, 1
          %p157 = scmp.lt.s32.totalorder %s154, 7
          %s158 = scalar_select %p157, %s154, 7
          %s159 = smul.addr %s156, 8
          %s160 = sadd.s32 %s158, %s159
          %s161 = smul.addr %s160, 4
          %s162 = scalar_lea.vmem %s0, %s161
          %s163 = smul.u32 8, %s20
        $region20: #{tpu_custom_call.1} parent=15 // pred_fallthru
          _
        // Predicated region
        $region21: #{tpu_custom_call.1} parent=15 // pred_check
          %p164 = pneg %p72
        $region22: #{tpu_custom_call.1} parent=15 // pred_check_branch
          %166 = sbr.rel (%p164) target = $region24
        $region23: #{tpu_custom_call.1} parent=15 // pred_region
          %p167 = scmp.lt.s32.totalorder %s19, 1
          %s168 = scalar_select %p167, %s19, 1
          %s169 = smul.addr %s168, 4
          %s170 = smul.addr %s169, 4
          %s171 = scalar_lea.vmem %s1, %s170
        $region24: #{tpu_custom_call.1} parent=15 // pred_fallthru
          _
        // Predicated region
        $region25: #{tpu_custom_call.1} parent=15 // pred_check
          %p172 = pneg %p98
        $region26: #{tpu_custom_call.1} parent=15 // pred_check_branch
          %174 = sbr.rel (%p172) target = $region28
        $region27: #{tpu_custom_call.1} parent=15 // pred_region
          %p175 = scmp.lt.s32.totalorder %s19, 1
          %s176 = scalar_select %p175, %s19, 1
          %s177 = smul.addr %s176, 2
          %s178 = scalar_lea.vmem %s2, %s177
        $region28: #{tpu_custom_call.1} parent=15 // pred_fallthru
          _
      $region16: #{tpu_custom_call.1} parent=5 // pred_fallthru
        _
      %p179 = scmp.le.s32.totalorder 1, %s12
      %p180 = scmp.lt.s32.totalorder %s12, 3
      %p181 = pnand %p179, %p180
      %p182 = pneg %p181
      // Predicated region
      $region29: #{tpu_custom_call.1} parent=5 // pred_check
        _
      $region30: #{tpu_custom_call.1} parent=5 // pred_check_branch
        %184 = sbr.rel (%p181) target = $region32
      $region31: #{tpu_custom_call.1} parent=5 // pred_region
        %s185 = ssub.s32 %s12, 1
        %s186 = smul.u32 8, %s22
        %p187 = scmp.lt.s32.totalorder %s21, 1
        %s188 = scalar_select %p187, %s21, 1
        %p189 = scmp.lt.s32.totalorder %s186, 7
        %s190 = scalar_select %p189, %s186, 7
        %s191 = smul.addr %s188, 8
        %s192 = sadd.s32 %s190, %s191
        %s193 = smul.addr %s192, 4
        %s194 = scalar_lea.vmem %s0, %s193
        %p195 = pneg %p52
        %p196 = pneg %p49
        %p197 = scmp.lt.s32.totalorder %s21, 1
        %s198 = scalar_select %p197, %s21, 1
        %s199 = smul.addr %s198, 4
        %s200 = smul.addr %s199, 4
        %s201 = scalar_lea.vmem %s1, %s200
        %p202 = pneg %p78
        %p203 = pneg %p75
        %p204 = scmp.lt.s32.totalorder %s21, 1
        %s205 = scalar_select %p204, %s21, 1
        %s206 = smul.addr %s205, 2
        %s207 = scalar_lea.vmem %s2, %s206
        %p208 = pneg %p104
        %p209 = pneg %p101
        %p210 = pneg %p132
        %p211 = pneg %p129
        %s212 = sand.u32 %s119, 1
        %s213 = scalar_lea.sflag [#allocation3], %s212
        %s214 = sand.u32 %s119, 1
        %s215 = smul.addr %s214, 2
        %s216 = scalar_lea.vmem [#allocation2], %s215
        %s217 = smul.u32 8, %s22
        %p218 = scmp.lt.s32.totalorder %s21, 1
        %s219 = scalar_select %p218, %s21, 1
        %p220 = scmp.lt.s32.totalorder %s217, 7
        %s221 = scalar_select %p220, %s217, 7
        %s222 = smul.addr %s219, 8
        %s223 = sadd.s32 %s221, %s222
        %s224 = smul.addr %s223, 4
        %s225 = scalar_lea.vmem %s0, %s224
        %s226 = smul.u32 8, %s22
        %p227 = scmp.lt.s32.totalorder %s21, 1
        %s228 = scalar_select %p227, %s21, 1
        %s229 = smul.addr %s228, 4
        %s230 = smul.addr %s229, 4
        %s231 = scalar_lea.vmem %s1, %s230
        %p232 = scmp.lt.s32.totalorder %s21, 1
        %s233 = scalar_select %p232, %s21, 1
        %s234 = smul.addr %s233, 2
        %s235 = scalar_lea.vmem %s2, %s234
        %v237 = vld [vmem:[%s225] sm:$0xf]
        %v238 = vld [vmem:[%s225 + $0x4] sm:$0xf]
        %v239 = vld [vmem:[%s225 + $0x8] sm:$0xf]
        %v240 = vld [vmem:[%s225 + $0xc] sm:$0xf]
        %v241 = vld [vmem:[%s225 + $0x10] sm:$0xf]
        %v242 = vld [vmem:[%s225 + $0x14] sm:$0xf]
        %v243 = vld [vmem:[%s225 + $0x18] sm:$0xf]
        %v244 = vld [vmem:[%s225 + $0x1c] sm:$0xf]
        %v245 = vld [vmem:[%s231] sm:$0xf]
        %v246 = vld [vmem:[%s231 + $0x4] sm:$0xf]
        %v247 = vld [vmem:[%s231 + $0x8] sm:$0xf]
        %v248 = vld [vmem:[%s231 + $0xc] sm:$0xf]
        %v257 = vunpack.c.l.b16 %v237
        %v258 = vunpack.c.l.b16 %v238
        %v259 = vunpack.c.l.b16 %v239
        %v260 = vunpack.c.l.b16 %v240
        %v261 = vunpack.c.l.b16 %v241
        %v262 = vunpack.c.l.b16 %v242
        %v263 = vunpack.c.l.b16 %v243
        %v264 = vunpack.c.l.b16 %v244
        %v265 = vpack.c.b16 %v258, %v257
        %v266 = vpack.c.b16 %v260, %v259
        %v267 = vpack.c.b16 %v262, %v261
        %v268 = vpack.c.b16 %v264, %v263
        %v273 = vunpack.c.l.b16 %v245
        %v274 = vunpack.c.l.b16 %v246
        %v275 = vunpack.c.l.b16 %v247
        %v276 = vunpack.c.l.b16 %v248
        %v277 = vpack.c.b16 %v274, %v273
        %v278 = vpack.c.b16 %v276, %v275
        %vm281 = vcmask 261120
        %v283 = vsel %vm281, %v265, 0
        %v286 = vsel %vm281, %v266, 0
        %v289 = vsel %vm281, %v267, 0
        %v292 = vsel %vm281, %v268, 0
        %294 = vmatprep.subr.bf16.mxu0 0
        %295 = vmatpush1.bf16.msra.mxu0 0
        %296 = vmatprep.subr.bf16.mxu0 0
        %297 = vmatpush1.bf16.msra.mxu0 0
        %298 = vmatprep.subr.bf16.mxu0 0
        %299 = vmatpush1.bf16.msra.mxu0 0
        %300 = vmatprep.subr.bf16.mxu0 0
        %301 = vmatpush1.bf16.msra.mxu0 0
        %302 = vmatprep.subr.bf16.mxu0 0
        %303 = vmatpush1.bf16.msra.mxu0 0
        %304 = vmatprep.subr.bf16.mxu0 0
        %305 = vmatpush1.bf16.msra.mxu0 0
        %306 = vmatprep.subr.bf16.mxu0 0
        %307 = vmatpush1.bf16.msra.mxu0 %v278
        %308 = vmatprep.subr.bf16.mxu0 0
        %309 = vmatpush1.bf16.msra.mxu0 %v277
        %310 = vmatprep.subr.bf16.mxu0 0
        %311 = vmatpush2.bf16.msra.mxu0 0
        %312 = vmatprep.subr.bf16.mxu0 0
        %313 = vmatpush2.bf16.msra.mxu0 0
        %314 = vmatprep.subr.bf16.mxu0 0
        %315 = vmatpush2.bf16.msra.mxu0 0
        %316 = vmatprep.subr.bf16.mxu0 0
        %317 = vmatpush2.bf16.msra.mxu0 0
        %318 = vmatprep.subr.bf16.mxu0 0
        %319 = vmatpush2.bf16.msra.mxu0 0
        %320 = vmatprep.subr.bf16.mxu0 0
        %321 = vmatpush2.bf16.msra.mxu0 0
        %322 = vmatprep.subr.bf16.mxu0 0
        %323 = vmatpush2.bf16.msra.mxu0 0
        %324 = vmatprep.subr.bf16.mxu0 0
        %325 = vmatpush2.bf16.msra.mxu0 0
        %326 = vmatprep.mubr.bf16.mxu0 0
        %327 = vmatmul.mubr.bf16.gmra.mxu0 %v283
        %v328 = vpop.f32.mrf.mxu0
        %v329 = vadd.f32 0.0, %v328
        %v330 = vpop.f32.mrf.mxu0
        %v331 = vpop.f32.mrf.mxu0
        %v332 = vadd.f32 0.0, %v331
        %v333 = vpop.f32.mrf.mxu0
        %334 = vmatprep.mubr.bf16.mxu0 0
        %335 = vmatmul.mubr.bf16.gmra.mxu0 %v286
        %v336 = vpop.f32.mrf.mxu0
        %v337 = vadd.f32 0.0, %v336
        %v338 = vpop.f32.mrf.mxu0
        %v339 = vpop.f32.mrf.mxu0
        %v340 = vadd.f32 0.0, %v339
        %v341 = vpop.f32.mrf.mxu0
        %342 = vmatprep.mubr.bf16.mxu0 0
        %343 = vmatmul.mubr.bf16.gmra.mxu0 %v289
        %v344 = vpop.f32.mrf.mxu0
        %v345 = vadd.f32 0.0, %v344
        %v346 = vpop.f32.mrf.mxu0
        %v347 = vpop.f32.mrf.mxu0
        %v348 = vadd.f32 0.0, %v347
        %v349 = vpop.f32.mrf.mxu0
        %350 = vmatprep.mubr.bf16.mxu0 0
        %351 = vmatmul.mubr.bf16.gmra.mxu0 %v292
        %v352 = vpop.f32.mrf.mxu0
        %v353 = vadd.f32 0.0, %v352
        %v354 = vpop.f32.mrf.mxu0
        %v355 = vpop.f32.mrf.mxu0
        %v356 = vadd.f32 0.0, %v355
        %v357 = vpop.f32.mrf.mxu0
        %358 = vdwg.mxu0
        %vm359 = vcmask 523264
        %v360 = vsel %vm359, %v329, -inf
        %361 = vmax.xlane.f32.xlu0 %v360
        %v362 = vpop.xlane.xlu0 %361
        %v363 = vsel %vm359, %v332, -inf
        %364 = vmax.xlane.f32.xlu0 %v363
        %v365 = vpop.xlane.xlu0 %364
        %v366 = vsel %vm359, %v337, -inf
        %367 = vmax.xlane.f32.xlu0 %v366
        %v368 = vpop.xlane.xlu0 %367
        %v369 = vsel %vm359, %v340, -inf
        %370 = vmax.xlane.f32.xlu0 %v369
        %v371 = vpop.xlane.xlu0 %370
        %v372 = vsel %vm359, %v345, -inf
        %373 = vmax.xlane.f32.xlu0 %v372
        %v374 = vpop.xlane.xlu0 %373
        %v375 = vsel %vm359, %v348, -inf
        %376 = vmax.xlane.f32.xlu0 %v375
        %v377 = vpop.xlane.xlu0 %376
        %v378 = vsel %vm359, %v353, -inf
        %379 = vmax.xlane.f32.xlu0 %v378
        %v380 = vpop.xlane.xlu0 %379
        %v381 = vsel %vm359, %v356, -inf
        %382 = vmax.xlane.f32.xlu0 %v381
        %v383 = vpop.xlane.xlu0 %382
        %v384 = vsub.f32 %v329, %v362
        %v385 = vsub.f32 %v332, %v365
        %v386 = vsub.f32 %v337, %v368
        %v387 = vsub.f32 %v340, %v371
        %v388 = vsub.f32 %v345, %v374
        %v389 = vsub.f32 %v348, %v377
        %v390 = vsub.f32 %v353, %v380
        %v391 = vsub.f32 %v356, %v383
        %v392 = vmul.f32 %v384, 1.442695
        %v393 = vpow.pop %v392
        %v394 = vmul.f32 %v385, 1.442695
        %v395 = vpow.pop %v394
        %v396 = vmul.f32 %v386, 1.442695
        %v397 = vpow.pop %v396
        %v398 = vmul.f32 %v387, 1.442695
        %v399 = vpow.pop %v398
        %v400 = vmul.f32 %v388, 1.442695
        %v401 = vpow.pop %v400
        %v402 = vmul.f32 %v389, 1.442695
        %v403 = vpow.pop %v402
        %v404 = vmul.f32 %v390, 1.442695
        %v405 = vpow.pop %v404
        %v406 = vmul.f32 %v391, 1.442695
        %v407 = vpow.pop %v406
        %v408 = vpack.c.bf16 %v395, %v393
        %v409 = vpack.c.bf16 %v399, %v397
        %v410 = vpack.c.bf16 %v403, %v401
        %v411 = vpack.c.bf16 %v407, %v405
        %v412 = vld [vmem:[%s235] sm:$0x3]
        %v414 = vsel %vm359, %v412, 0
        %v417 = vsel %vm359, %v408, 0
        %v420 = vsel %vm359, %v409, 0
        %v423 = vsel %vm359, %v410, 0
        %v426 = vsel %vm359, %v411, 0
        %428 = vmatprep.subr.bf16.mxu0 0
        %429 = vmatpush1.bf16.xpose.msra.mxu0 0
        %430 = vmatprep.subr.bf16.mxu0 0
        %431 = vmatpush1.bf16.xpose.msra.mxu0 0
        %432 = vmatprep.subr.bf16.mxu0 0
        %433 = vmatpush1.bf16.xpose.msra.mxu0 0
        %434 = vmatprep.subr.bf16.mxu0 0
        %435 = vmatpush1.bf16.xpose.msra.mxu0 0
        %436 = vmatprep.subr.bf16.mxu0 0
        %437 = vmatpush1.bf16.xpose.msra.mxu0 %v426
        %438 = vmatprep.subr.bf16.mxu0 0
        %439 = vmatpush1.bf16.xpose.msra.mxu0 %v423
        %440 = vmatprep.subr.bf16.mxu0 0
        %441 = vmatpush1.bf16.xpose.msra.mxu0 %v420
        %442 = vmatprep.subr.bf16.mxu0 0
        %443 = vmatpush1.bf16.xpose.msra.mxu0 %v417
        %444 = vmatprep.subr.bf16.mxu0 0
        %445 = vmatpush2.bf16.xpose.msra.mxu0 0
        %446 = vmatprep.subr.bf16.mxu0 0
        %447 = vmatpush2.bf16.xpose.msra.mxu0 0
        %448 = vmatprep.subr.bf16.mxu0 0
        %449 = vmatpush2.bf16.xpose.msra.mxu0 0
        %450 = vmatprep.subr.bf16.mxu0 0
        %451 = vmatpush2.bf16.xpose.msra.mxu0 0
        %452 = vmatprep.subr.bf16.mxu0 0
        %453 = vmatpush2.bf16.xpose.msra.mxu0 0
        %454 = vmatprep.subr.bf16.mxu0 0
        %455 = vmatpush2.bf16.xpose.msra.mxu0 0
        %456 = vmatprep.subr.bf16.mxu0 0
        %457 = vmatpush2.bf16.xpose.msra.mxu0 0
        %458 = vmatprep.subr.bf16.mxu0 0
        %459 = vmatpush2.bf16.xpose.msra.mxu0 0
        %460 = vmatprep.mubr.bf16.mxu0 0
        %461 = vmatmul.mubr.bf16.gmra.mxu0 %v414
        %v462 = vpop.f32.mrf.mxu0
        %v463 = vadd.f32 0.0, %v462
        %v464 = vpop.f32.mrf.mxu0
        %v465 = vpop.f32.mrf.mxu0
        %v466 = vpop.f32.mrf.mxu0
        %467 = vdwg.mxu0
        %v468 = vrcp.pop %v463
        %v469 = vlaneseq
        %v470 = vshrl.u32 %v469, 7
        %v471 = vsub.s32 2, %v470
        %v472 = vrot.slane %v468, %v471
        %v473 = vmul.f32 %v463, %v472
        %vm474 = vcmask 517120
        %475 = vst.msk [vmem:[%s216] sm:$0x3] %vm474, %v473
        %s476 = sand.u32 %s119, 1
        %s477 = scalar_lea.sflag [#allocation3], %s476
        %s478 = sand.u32 %s119, 1
        %s479 = smul.addr %s478, 2
        %s480 = scalar_lea.vmem [#allocation2], %s479
        // Predicated region
        $region33: #{tpu_custom_call.1} parent=31 // pred_check
          %p481 = pneg %p129
        $region34: #{tpu_custom_call.1} parent=31 // pred_check_branch
          %483 = sbr.rel (%p481) target = $region36
        $region35: #{tpu_custom_call.1} parent=31 // pred_region
          %s485 = ssub.s32 32, 32
          %486 = vsyncadd %s477, %s485
          %s487 = sadd.s32 %s22, %s21
          %s488 = smul.addr %s487, 32
          %s489 = scalar_lea.hbm %s3, %s488
          %s491 = sshll.u32 %s480, 4
          %s492 = int_to_ptr.vmem [resolvable:$true] %s491
          %494 = dma.vmem_to_hbm [thread:$0]  %s492, 32, %s489, %s477
        $region36: #{tpu_custom_call.1} parent=31 // pred_fallthru
          _
      $region32: #{tpu_custom_call.1} parent=5 // pred_fallthru
        _
      %p495 = scmp.le.s32.totalorder 2, %s12
      // Predicated region
      $region37: #{tpu_custom_call.1} parent=5 // pred_check
        %p496 = pneg %p495
      $region38: #{tpu_custom_call.1} parent=5 // pred_check_branch
        %498 = sbr.rel (%p496) target = $region40
      $region39: #{tpu_custom_call.1} parent=5 // pred_region
        %s499 = ssub.s32 %s12, 2
        // Predicated region
        $region41: #{tpu_custom_call.1} parent=39 // pred_check
          %p500 = pneg %p135
        $region42: #{tpu_custom_call.1} parent=39 // pred_check_branch
          %502 = sbr.rel (%p500) target = $region44
        $region43: #{tpu_custom_call.1} parent=39 // pred_region
          %s503 = sand.u32 %s120, 1
          %s504 = scalar_lea.sflag [#allocation3], %s503
          %s505 = sand.u32 %s120, 1
          %s506 = smul.addr %s505, 2
          %s507 = scalar_lea.vmem [#allocation2], %s506
          %508 = dma.done %s504, 32
        $region44: #{tpu_custom_call.1} parent=39 // pred_fallthru
          _
      $region40: #{tpu_custom_call.1} parent=5 // pred_fallthru
        _
    $region6: #{tpu_custom_call.1} parent=1 // loop_footer
      %s16 = sadd.s32 1, %s12
    $region7: #{tpu_custom_call.1} parent=1 // loop_footer_branch
      %11 = sbr.rel target = $region3
    $region8: #{tpu_custom_call.1} parent=1 // loop_exit
      _
    %509 = vsyncpa [#allocation3], 1
    %s510 = scalar_lea.sflag [#allocation3], 1
    %511 = vsyncpa %s510, 1

</llo_original>
